<compile_context>
chip_gen: v6e
topology: v6e:2x2x1
jax: 0.10.0
libtpu: 0.0.40
codegen_flags: <defaults>
</compile_context>

<pallas_src>
import jax
import jax.numpy as jnp
from jax import lax
from jax.experimental import pallas as pl
from jax.experimental.pallas import tpu as pltpu

NEG_INF = float("-inf")


def _make_kernel(block_b, n_obj, n_tok, obj_dim, sem_dim, proj_dim):
    Bb, Ni, Ns, Do, Ds, P = block_b, n_obj, n_tok, obj_dim, sem_dim, proj_dim
    R, C = Bb * Ni, Bb * Ns   # flattened (object-row, token-column) extents

    def kernel(i_ref, s_ref, rowp_ref, colp_ref,
               wi_ref, ws_ref, wc_ref, bias_ref, out_ref):
        # Leading-dim collapses are layout-preserving when Ni/Ns are multiples
        # of the sublane tile (8); otherwise Mosaic inserts a small relayout.
        i_flat = i_ref[...].reshape(R, Do)          # (R, Do)
        s_flat = s_ref[...].reshape(C, Ds)          # (C, Ds)

        rowp = rowp_ref[...]                        # (R, 4): xi, yi, lo, hi
        colp = colp_ref[0]                          # (8, C): xs, ys, pad...
        xi, yi = rowp[:, 0:1], rowp[:, 1:2]         # (R, 1)
        lo, hi = rowp[:, 2:3], rowp[:, 3:4]         # (R, 1) valid col bounds
        xs, ys = colp[0:1, :], colp[1:2, :]         # (1, C)

        # --- block-diagonal pairwise distances + masked softmax -------------
        # All-pairs broadcast; cross-batch / padded-token entries are masked to
        # -inf so they contribute exp(-inf)=0 to the row softmax.
        dist = jnp.sqrt((xi - xs) ** 2 + (yi - ys) ** 2)            # (R, C)
        colf = lax.broadcasted_iota(jnp.int32, (R, C), 1).astype(jnp.float32)
        valid = jnp.logical_and(colf >= lo, colf < hi)
        masked = jnp.where(valid, dist, NEG_INF)
        m = jnp.max(masked, axis=-1, keepdims=True)
        e = jnp.exp(masked - m)
        # NOTE: if a batch has zero valid tokens the whole row is -inf and the
        # softmax row is NaN — identical to the PyTorch reference semantics.
        att = e / jnp.sum(e, axis=-1, keepdims=True)                # exact div

        # --- projections (batch flattened into the MXU M dim) ---------------
        bi = bias_ref[0:1, :P]
        bs = bias_ref[1:2, :P]
        bc = bias_ref[2:3, :Do]
        i_proj = jnp.maximum(
            jnp.dot(i_flat, wi_ref[...],
                    preferred_element_type=jnp.float32) + bi, 0.0)  # (R, P)
        s_proj = jnp.maximum(
            jnp.dot(s_flat, ws_ref[...],
                    preferred_element_type=jnp.float32) + bs, 0.0)  # (C, P)

        # --- split combine: relu(i_proj@Wc_top + att@(s_proj@Wc_bot) + bc) --
        s_ctx = jnp.dot(s_proj, wc_ref[P:2 * P, :],
                        preferred_element_type=jnp.float32)         # (C, Do)
        pre = (jnp.dot(i_proj, wc_ref[0:P, :],
                       preferred_element_type=jnp.float32)
               + jnp.dot(att, s_ctx, preferred_element_type=jnp.float32)
               + bc)                                                # (R, Do)
        i_new = jnp.maximum(pre, 0.0)

        out_ref[...] = (i_flat + i_new).reshape(Bb, Ni, Do)

    return kernel


def visual_graph_aggregator(i, s, pi, ps, mask_s, params, block_b=None):
    B, Ni, Do = i.shape
    _, Ns, Ds = s.shape
    P = params["wi"].shape[1]
    assert params["wc"].shape == (2 * P, Do)

    if block_b is None:
        if B <= 16:
            block_b = B                      # whole batch in one step
        else:
            # Cap at 16 (fills the 256-wide MXU on v6e/v7x when Ni>=16, bounds
            # the O(block_b^2) flat-grid cost) while keeping >=2 grid steps
            # for v7x's two TensorCores.
            block_b = next(d for d in (16, 8, 4, 2, 1) if B % d == 0)
    assert B % block_b == 0, "B must be a multiple of block_b (pad if needed)"
    n_steps = B // block_b
    C = block_b * Ns

    # --- row slab: per flattened object row r = b*Ni + q ----------------------
    # lanes: [xi, yi, lo, hi] where [lo, hi) is that row's valid column range in
    # the block-diagonal attention matrix (lo = in-block batch index * Ns).
    bidx = jnp.arange(B, dtype=jnp.int32)
    lo = ((bidx % block_b) * Ns).astype(jnp.float32)                 # (B,)
    hi = lo + mask_s.astype(jnp.float32)                             # (B,)
    rowp = jnp.stack(
        [pi[:, :, 0], pi[:, :, 1],
         jnp.broadcast_to(lo[:, None], (B, Ni)),
         jnp.broadcast_to(hi[:, None], (B, Ni))], axis=-1)           # (B, Ni, 4)
    rowp = rowp.reshape(B * Ni, 4)

    # --- col slab: xs/ys per flattened token column, already lane-oriented ----
    colp = jnp.zeros((n_steps, 8, C), jnp.float32)
    colp = colp.at[:, 0, :].set(ps[:, :, 0].reshape(n_steps, C))
    colp = colp.at[:, 1, :].set(ps[:, :, 1].reshape(n_steps, C))

    # --- bias slab: one resident DMA ------------------------------------------
    W = max(P, Do)
    bias = jnp.zeros((3, W), jnp.float32)
    bias = bias.at[0, :P].set(params["bi"])
    bias = bias.at[1, :P].set(params["bs"])
    bias = bias.at[2, :Do].set(params["bc"])

    kernel = _make_kernel(block_b, Ni, Ns, Do, Ds, P)

    return pl.pallas_call(
        kernel,
        out_shape=jax.ShapeDtypeStruct((B, Ni, Do), jnp.float32),
        grid=(n_steps,),
        in_specs=[
            pl.BlockSpec((block_b, Ni, Do),  lambda g: (g, 0, 0)),    # i
            pl.BlockSpec((block_b, Ns, Ds),  lambda g: (g, 0, 0)),    # s
            pl.BlockSpec((block_b * Ni, 4),  lambda g: (g, 0)),       # row slab
            pl.BlockSpec((1, 8, C),          lambda g: (g, 0, 0)),    # col slab
            pl.BlockSpec((Do, P),            lambda g: (0, 0)),       # wi (resident)
            pl.BlockSpec((Ds, P),            lambda g: (0, 0)),       # ws (resident)
            pl.BlockSpec((2 * P, Do),        lambda g: (0, 0)),       # wc (resident)
            pl.BlockSpec((3, W),             lambda g: (0, 0)),       # bias slab
        ],
        out_specs=pl.BlockSpec((block_b, Ni, Do), lambda g: (g, 0, 0)),
        input_output_aliases={0: 0},   # residual input `i` aliases the output
        compiler_params=pltpu.CompilerParams(dimension_semantics=("parallel",)),
    )(i, s, rowp, colp, params["wi"], params["ws"], params["wc"], bias)


def reference(i, s, pi, ps, mask_s, params):
    """Pure-JAX port of the PyTorch forward for verification."""
    xi = pi[:, :, 0:1]
    xs = jnp.transpose(ps[:, :, 0:1], (0, 2, 1))
    yi = pi[:, :, 1:2]
    ys = jnp.transpose(ps[:, :, 1:2], (0, 2, 1))
    dist = jnp.sqrt((xi - xs) ** 2 + (yi - ys) ** 2)
    mask = jnp.arange(dist.shape[2])[None, None, :] < mask_s[:, None, None]
    masked = jnp.where(mask, dist, -jnp.inf)
    att = jax.nn.softmax(masked, axis=2)
    relu = lambda x: jnp.maximum(x, 0.0)
    i_proj = relu(i @ params["wi"] + params["bi"])
    s_proj = relu(s @ params["ws"] + params["bs"])
    i_att = att @ s_proj
    cat = jnp.concatenate([i_proj, i_att], axis=2)
    i_new = relu(cat @ params["wc"] + params["bc"])
    return i + i_new


if __name__ == "__main__":
    # Small shapes consistent with the module's forward signature.
    B, Ni, Ns = 2, 16, 8
    OBJ_DIM, SEM_DIM, PROJ_DIM = 128, 64, 64

    key = jax.random.PRNGKey(0)
    k = jax.random.split(key, 10)

    i  = jax.random.normal(k[0], (B, Ni, OBJ_DIM), jnp.float32)
    s  = jax.random.normal(k[1], (B, Ns, SEM_DIM), jnp.float32)
    pi = jax.random.uniform(k[2], (B, Ni, 2), jnp.float32)
    ps = jax.random.uniform(k[3], (B, Ns, 2), jnp.float32)
    mask_s = jnp.array([5, 8], dtype=jnp.int32)   # num valid tokens per batch (<= Ns)

    # Deterministic effective weights for the three weight-norm FC layers.
    params = {
        "wi": 0.05 * jax.random.normal(k[4], (OBJ_DIM, PROJ_DIM), jnp.float32),
        "bi": 0.01 * jax.random.normal(k[5], (PROJ_DIM,), jnp.float32),
        "ws": 0.05 * jax.random.normal(k[6], (SEM_DIM, PROJ_DIM), jnp.float32),
        "bs": 0.01 * jax.random.normal(k[7], (PROJ_DIM,), jnp.float32),
        "wc": 0.05 * jax.random.normal(k[8], (2 * PROJ_DIM, OBJ_DIM), jnp.float32),
        "bc": 0.01 * jax.random.normal(k[9], (OBJ_DIM,), jnp.float32),
    }

    # Reference first (also guards against any aliasing surprise on `i`).
    ref = reference(i, s, pi, ps, mask_s, params)

    out = visual_graph_aggregator(i, s, pi, ps, mask_s, params)
    out = jax.block_until_ready(out)

    assert out.shape == (B, Ni, OBJ_DIM)
    # Tolerance absorbs MXU f32(bf16-pass) rounding differences between the
    # re-associated kernel matmuls and the reference contraction order.
    assert jnp.allclose(out, ref, atol=2e-3, rtol=2e-3), "mismatch vs JAX reference"

    print("KERNEL_OK")
</pallas_src>

<mosaic_0001>
module attributes {stable_mosaic.version = 11 : i64} {
  func.func @kernel(%arg0: i32, %arg1: memref<2x16x128xf32, #tpu.memory_space<vmem>>, %arg2: memref<2x8x64xf32, #tpu.memory_space<vmem>>, %arg3: memref<32x4xf32, #tpu.memory_space<vmem>>, %arg4: memref<1x8x16xf32, #tpu.memory_space<vmem>>, %arg5: memref<128x64xf32, #tpu.memory_space<vmem>>, %arg6: memref<64x64xf32, #tpu.memory_space<vmem>>, %arg7: memref<128x128xf32, #tpu.memory_space<vmem>>, %arg8: memref<3x128xf32, #tpu.memory_space<vmem>>, %arg9: memref<2x16x128xf32, #tpu.memory_space<vmem>>) attributes {dimension_semantics = [#tpu.dimension_semantics<parallel>], iteration_bounds = array<i64: 1>, scalar_prefetch = 0 : i64, scratch_operands = 0 : i64, tpu.core_type = #tpu.core_type<tc>, window_params = [{transform_indices = @transform_0, window_bounds = array<i64: 2, 16, 128>}, {transform_indices = @transform_1, window_bounds = array<i64: 2, 8, 64>}, {transform_indices = @transform_2, window_bounds = array<i64: 32, 4>}, {transform_indices = @transform_3, window_bounds = array<i64: 1, 8, 16>}, {pipeline_mode = #tpu.pipeline_mode<synchronous>, transform_indices = @transform_4, window_bounds = array<i64: 128, 64>}, {pipeline_mode = #tpu.pipeline_mode<synchronous>, transform_indices = @transform_5, window_bounds = array<i64: 64, 64>}, {pipeline_mode = #tpu.pipeline_mode<synchronous>, transform_indices = @transform_6, window_bounds = array<i64: 128, 128>}, {pipeline_mode = #tpu.pipeline_mode<synchronous>, transform_indices = @transform_7, window_bounds = array<i64: 3, 128>}, {transform_indices = @transform_8, window_bounds = array<i64: 2, 16, 128>}]} {
    %c0 = arith.constant 0 : index
    %c0_0 = arith.constant 0 : index
    %c0_1 = arith.constant 0 : index
    %0 = vector.load %arg1[%c0, %c0_0, %c0_1] : memref<2x16x128xf32, #tpu.memory_space<vmem>>, vector<2x16x128xf32>
    %1 = vector.shape_cast %0 : vector<2x16x128xf32> to vector<32x128xf32>
    %c0_2 = arith.constant 0 : index
    %c0_3 = arith.constant 0 : index
    %c0_4 = arith.constant 0 : index
    %2 = vector.load %arg2[%c0_2, %c0_3, %c0_4] : memref<2x8x64xf32, #tpu.memory_space<vmem>>, vector<2x8x64xf32>
    %3 = vector.shape_cast %2 : vector<2x8x64xf32> to vector<16x64xf32>
    %c0_5 = arith.constant 0 : index
    %c0_6 = arith.constant 0 : index
    %4 = vector.load %arg3[%c0_5, %c0_6] : memref<32x4xf32, #tpu.memory_space<vmem>>, vector<32x4xf32>
    %c0_7 = arith.constant 0 : index
    %c0_8 = arith.constant 0 : index
    %c0_9 = arith.constant 0 : index
    %5 = vector.load %arg4[%c0_7, %c0_8, %c0_9] : memref<1x8x16xf32, #tpu.memory_space<vmem>>, vector<1x8x16xf32>
    %6 = vector.shape_cast %5 : vector<1x8x16xf32> to vector<8x16xf32>
    %7 = vector.extract_strided_slice %4 {offsets = [0, 0], sizes = [32, 1], strides = [1, 1]} : vector<32x4xf32> to vector<32x1xf32>
    %8 = vector.extract_strided_slice %4 {offsets = [0, 1], sizes = [32, 1], strides = [1, 1]} : vector<32x4xf32> to vector<32x1xf32>
    %9 = vector.extract_strided_slice %4 {offsets = [0, 2], sizes = [32, 1], strides = [1, 1]} : vector<32x4xf32> to vector<32x1xf32>
    %10 = vector.extract_strided_slice %4 {offsets = [0, 3], sizes = [32, 1], strides = [1, 1]} : vector<32x4xf32> to vector<32x1xf32>
    %11 = vector.extract_strided_slice %6 {offsets = [0, 0], sizes = [1, 16], strides = [1, 1]} : vector<8x16xf32> to vector<1x16xf32>
    %12 = vector.extract_strided_slice %6 {offsets = [1, 0], sizes = [1, 16], strides = [1, 1]} : vector<8x16xf32> to vector<1x16xf32>
    %13 = vector.broadcast %7 : vector<32x1xf32> to vector<32x16xf32>
    %14 = vector.broadcast %11 : vector<1x16xf32> to vector<32x16xf32>
    %15 = arith.subf %13, %14 : vector<32x16xf32>
    %16 = arith.mulf %15, %15 : vector<32x16xf32>
    %17 = vector.broadcast %8 : vector<32x1xf32> to vector<32x16xf32>
    %18 = vector.broadcast %12 : vector<1x16xf32> to vector<32x16xf32>
    %19 = arith.subf %17, %18 : vector<32x16xf32>
    %20 = arith.mulf %19, %19 : vector<32x16xf32>
    %21 = arith.addf %16, %20 : vector<32x16xf32>
    %22 = math.sqrt %21 : vector<32x16xf32>
    %23 = tpu.iota {dimensions = array<i32: 1>} : vector<32x16xi32>
    %24 = arith.sitofp %23 : vector<32x16xi32> to vector<32x16xf32>
    %25 = vector.broadcast %9 : vector<32x1xf32> to vector<32x16xf32>
    %26 = arith.cmpf oge, %24, %25 : vector<32x16xf32>
    %27 = vector.broadcast %10 : vector<32x1xf32> to vector<32x16xf32>
    %28 = arith.cmpf olt, %24, %27 : vector<32x16xf32>
    %29 = arith.andi %26, %28 : vector<32x16xi1>
    %cst = arith.constant 0xFF800000 : f32
    %30 = vector.broadcast %cst : f32 to vector<32x16xf32>
    %31 = arith.select %29, %22, %30 : vector<32x16xi1>, vector<32x16xf32>
    %cst_10 = arith.constant dense<0xFF800000> : vector<32xf32>
    %32 = vector.multi_reduction <maximumf>, %31, %cst_10 [1] : vector<32x16xf32> to vector<32xf32>
    %33 = vector.shape_cast %32 : vector<32xf32> to vector<32x1xf32>
    %34 = vector.broadcast %33 : vector<32x1xf32> to vector<32x16xf32>
    %35 = arith.subf %31, %34 : vector<32x16xf32>
    %36 = math.exp %35 : vector<32x16xf32>
    %cst_11 = arith.constant dense<0.000000e+00> : vector<32xf32>
    %37 = vector.multi_reduction <add>, %36, %cst_11 [1] : vector<32x16xf32> to vector<32xf32>
    %38 = vector.shape_cast %37 : vector<32xf32> to vector<32x1xf32>
    %39 = vector.broadcast %38 : vector<32x1xf32> to vector<32x16xf32>
    %40 = arith.divf %36, %39 : vector<32x16xf32>
    %c0_12 = arith.constant 0 : index
    %c0_13 = arith.constant 0 : index
    %41 = vector.load %arg8[%c0_12, %c0_13] : memref<3x128xf32, #tpu.memory_space<vmem>>, vector<1x64xf32>
    %c1 = arith.constant 1 : index
    %c0_14 = arith.constant 0 : index
    %42 = vector.load %arg8[%c1, %c0_14] : memref<3x128xf32, #tpu.memory_space<vmem>>, vector<1x64xf32>
    %c2 = arith.constant 2 : index
    %c0_15 = arith.constant 0 : index
    %43 = vector.load %arg8[%c2, %c0_15] : memref<3x128xf32, #tpu.memory_space<vmem>>, vector<1x128xf32>
    %c0_16 = arith.constant 0 : index
    %c0_17 = arith.constant 0 : index
    %44 = vector.load %arg5[%c0_16, %c0_17] : memref<128x64xf32, #tpu.memory_space<vmem>>, vector<128x64xf32>
    %cst_18 = arith.constant dense<0.000000e+00> : vector<32x64xf32>
    %45 = tpu.matmul %1, %44, %cst_18 {dimension_numbers = #tpu.dot_dimension_numbers<[1], [0], [0], [1], [0, 0, 1, 1], [], []>} : vector<32x128xf32>, vector<128x64xf32>, vector<32x64xf32> -> vector<32x64xf32>
    %46 = vector.broadcast %41 : vector<1x64xf32> to vector<32x64xf32>
    %47 = arith.addf %45, %46 : vector<32x64xf32>
    %cst_19 = arith.constant 0.000000e+00 : f32
    %48 = vector.broadcast %cst_19 : f32 to vector<32x64xf32>
    %49 = arith.maximumf %47, %48 : vector<32x64xf32>
    %c0_20 = arith.constant 0 : index
    %c0_21 = arith.constant 0 : index
    %50 = vector.load %arg6[%c0_20, %c0_21] : memref<64x64xf32, #tpu.memory_space<vmem>>, vector<64x64xf32>
    %cst_22 = arith.constant dense<0.000000e+00> : vector<16x64xf32>
    %51 = tpu.matmul %3, %50, %cst_22 {dimension_numbers = #tpu.dot_dimension_numbers<[1], [0], [0], [1], [0, 0, 1, 1], [], []>} : vector<16x64xf32>, vector<64x64xf32>, vector<16x64xf32> -> vector<16x64xf32>
    %52 = vector.broadcast %42 : vector<1x64xf32> to vector<16x64xf32>
    %53 = arith.addf %51, %52 : vector<16x64xf32>
    %cst_23 = arith.constant 0.000000e+00 : f32
    %54 = vector.broadcast %cst_23 : f32 to vector<16x64xf32>
    %55 = arith.maximumf %53, %54 : vector<16x64xf32>
    %c64 = arith.constant 64 : index
    %c0_24 = arith.constant 0 : index
    %56 = vector.load %arg7[%c64, %c0_24] : memref<128x128xf32, #tpu.memory_space<vmem>>, vector<64x128xf32>
    %cst_25 = arith.constant dense<0.000000e+00> : vector<16x128xf32>
    %57 = tpu.matmul %55, %56, %cst_25 {dimension_numbers = #tpu.dot_dimension_numbers<[1], [0], [0], [1], [0, 0, 1, 1], [], []>} : vector<16x64xf32>, vector<64x128xf32>, vector<16x128xf32> -> vector<16x128xf32>
    %c0_26 = arith.constant 0 : index
    %c0_27 = arith.constant 0 : index
    %58 = vector.load %arg7[%c0_26, %c0_27] : memref<128x128xf32, #tpu.memory_space<vmem>>, vector<64x128xf32>
    %cst_28 = arith.constant dense<0.000000e+00> : vector<32x128xf32>
    %59 = tpu.matmul %49, %58, %cst_28 {dimension_numbers = #tpu.dot_dimension_numbers<[1], [0], [0], [1], [0, 0, 1, 1], [], []>} : vector<32x64xf32>, vector<64x128xf32>, vector<32x128xf32> -> vector<32x128xf32>
    %cst_29 = arith.constant dense<0.000000e+00> : vector<32x128xf32>
    %60 = tpu.matmul %40, %57, %cst_29 {dimension_numbers = #tpu.dot_dimension_numbers<[1], [0], [0], [1], [0, 0, 1, 1], [], []>} : vector<32x16xf32>, vector<16x128xf32>, vector<32x128xf32> -> vector<32x128xf32>
    %61 = arith.addf %59, %60 : vector<32x128xf32>
    %62 = vector.broadcast %43 : vector<1x128xf32> to vector<32x128xf32>
    %63 = arith.addf %61, %62 : vector<32x128xf32>
    %cst_30 = arith.constant 0.000000e+00 : f32
    %64 = vector.broadcast %cst_30 : f32 to vector<32x128xf32>
    %65 = arith.maximumf %63, %64 : vector<32x128xf32>
    %66 = arith.addf %1, %65 : vector<32x128xf32>
    %67 = vector.shape_cast %66 : vector<32x128xf32> to vector<2x16x128xf32>
    %c0_31 = arith.constant 0 : index
    %c0_32 = arith.constant 0 : index
    %c0_33 = arith.constant 0 : index
    %68 = vector.load %arg9[%c0_31, %c0_32, %c0_33] : memref<2x16x128xf32, #tpu.memory_space<vmem>>, vector<2x16x128xf32>
    tpu.vector_store %arg9[%c0_31, %c0_32, %c0_33], %67 {strides = array<i32>} : memref<2x16x128xf32, #tpu.memory_space<vmem>>, vector<2x16x128xf32>,
    return
  }
  func.func @transform_0(%arg0: i32) -> (i32, i32, i32) {
    %c0_i32 = arith.constant 0 : i32
    %c0_i32_0 = arith.constant 0 : i32
    %c0_i32_1 = arith.constant 0 : i32
    return %arg0, %c0_i32, %c0_i32_0 : i32, i32, i32
  }
  func.func @transform_1(%arg0: i32) -> (i32, i32, i32) {
    %c0_i32 = arith.constant 0 : i32
    %c0_i32_0 = arith.constant 0 : i32
    %c0_i32_1 = arith.constant 0 : i32
    return %arg0, %c0_i32, %c0_i32_0 : i32, i32, i32
  }
  func.func @transform_2(%arg0: i32) -> (i32, i32) {
    %c0_i32 = arith.constant 0 : i32
    %c0_i32_0 = arith.constant 0 : i32
    return %arg0, %c0_i32 : i32, i32
  }
  func.func @transform_3(%arg0: i32) -> (i32, i32, i32) {
    %c0_i32 = arith.constant 0 : i32
    %c0_i32_0 = arith.constant 0 : i32
    %c0_i32_1 = arith.constant 0 : i32
    return %arg0, %c0_i32, %c0_i32_0 : i32, i32, i32
  }
  func.func @transform_4(%arg0: i32) -> (i32, i32) {
    %c0_i32 = arith.constant 0 : i32
    %c0_i32_0 = arith.constant 0 : i32
    %c0_i32_1 = arith.constant 0 : i32
    return %c0_i32, %c0_i32_0 : i32, i32
  }
  func.func @transform_5(%arg0: i32) -> (i32, i32) {
    %c0_i32 = arith.constant 0 : i32
    %c0_i32_0 = arith.constant 0 : i32
    %c0_i32_1 = arith.constant 0 : i32
    return %c0_i32, %c0_i32_0 : i32, i32
  }
  func.func @transform_6(%arg0: i32) -> (i32, i32) {
    %c0_i32 = arith.constant 0 : i32
    %c0_i32_0 = arith.constant 0 : i32
    %c0_i32_1 = arith.constant 0 : i32
    return %c0_i32, %c0_i32_0 : i32, i32
  }
  func.func @transform_7(%arg0: i32) -> (i32, i32) {
    %c0_i32 = arith.constant 0 : i32
    %c0_i32_0 = arith.constant 0 : i32
    %c0_i32_1 = arith.constant 0 : i32
    return %c0_i32, %c0_i32_0 : i32, i32
  }
  func.func @transform_8(%arg0: i32) -> (i32, i32, i32) {
    %c0_i32 = arith.constant 0 : i32
    %c0_i32_0 = arith.constant 0 : i32
    %c0_i32_1 = arith.constant 0 : i32
    return %arg0, %c0_i32, %c0_i32_0 : i32, i32, i32
  }
}

</mosaic_0001>

<llo_original>
// kernel: tpu_custom_call.1
$region0: #{tpu_custom_call.1}
  #allocation0 [shape = 'u32[]', space=smem, size = 0x4, offset = 0x4, fixed_abs, tag = 'smem constant byte address 0x4 - core index']
  #allocation1 [shape = 'u32[144,128]{1,0:T(1,128)}', space=vmem, size = 0x12000, scoped, tag = 'internal scratch']
  %s0 = inlined_call_operand.hbm [shape: f32[2,16,128], index: 0, kind: input, shape index: {}, may-alias: {0,8}]
  %s1 = inlined_call_operand.vmem [shape: f32[2,8,64], index: 1, kind: input, shape index: {}]
  %s2 = inlined_call_operand.vmem [shape: f32[32,4], index: 2, kind: input, shape index: {}]
  %s3 = inlined_call_operand.vmem [shape: f32[1,8,16], index: 3, kind: input, shape index: {}]
  %s4 = inlined_call_operand.vmem [shape: f32[128,64], index: 4, kind: input, shape index: {}]
  %s5 = inlined_call_operand.vmem [shape: f32[64,64], index: 5, kind: input, shape index: {}]
  %s6 = inlined_call_operand.vmem [shape: f32[128,128], index: 6, kind: input, shape index: {}]
  %s7 = inlined_call_operand.vmem [shape: f32[3,128], index: 7, kind: input, shape index: {}]
  %s8 = inlined_call_operand.hbm [shape: f32[2,16,128], index: 8, kind: output, shape index: {}, may-alias: {0,8}]
  %s9 = sld [smem:[#allocation0]]
  $region46: #{tpu_custom_call.1} parent=0
    _
  %s11 = ssub.s32 1, %s9
  %s12 = scalar_select 0, %s11, %s9
  $region1: #{tpu_custom_call.1} parent=0
    #allocation2 [shape = 'u8[16384]{0}', space=vmem, size = 0x4000, scoped, tag = 'input window, operand 0, single buffered']
    #allocation3 [shape = 's32[1]{0}', space=sflag, size = 0x4, scoped, tag = 'scoped memory for tpu_custom_call.1']
    #allocation4 [shape = 's32[1]{0}', space=sflag, size = 0x4, scoped, tag = 'scoped memory for tpu_custom_call.1']
    #allocation5 [shape = 'u8[16384]{0}', space=vmem, size = 0x4000, scoped, tag = 'output window, operand 0, single buffered']
    %13 = vsyncpa [#allocation3], 0
    %14 = vsyncpa [#allocation4], 0
    // Predicated region
    $region2: #{tpu_custom_call.1} parent=1 // pred_check
      _
    $region3: #{tpu_custom_call.1} parent=1 // pred_check_branch
      %16 = sbr.rel (0) target = $region5
    $region4: #{tpu_custom_call.1} parent=1 // pred_region
      %s18 = ssub.s32 512, 512
      %19 = vsyncadd [#allocation3], %s18
      %s20 = sshll.u32 [#allocation2], 4
      %s21 = int_to_ptr.vmem [resolvable:$true] %s20
      %26 = dma.hbm_to_vmem [thread:$0]  %s0, 512, %s21, [#allocation3], 128, 128, 8
    $region5: #{tpu_custom_call.1} parent=1 // pred_fallthru
      _
    // Predicated region
    $region6: #{tpu_custom_call.1} parent=1 // pred_check
      _
    $region7: #{tpu_custom_call.1} parent=1 // pred_check_branch
      %28 = sbr.rel (0) target = $region9
    $region8: #{tpu_custom_call.1} parent=1 // pred_region
      _
    $region9: #{tpu_custom_call.1} parent=1 // pred_fallthru
      _
    // Predicated region
    $region10: #{tpu_custom_call.1} parent=1 // pred_check
      _
    $region11: #{tpu_custom_call.1} parent=1 // pred_check_branch
      %30 = sbr.rel (0) target = $region13
    $region12: #{tpu_custom_call.1} parent=1 // pred_region
      _
    $region13: #{tpu_custom_call.1} parent=1 // pred_fallthru
      _
    // Predicated region
    $region14: #{tpu_custom_call.1} parent=1 // pred_check
      _
    $region15: #{tpu_custom_call.1} parent=1 // pred_check_branch
      %32 = sbr.rel (0) target = $region17
    $region16: #{tpu_custom_call.1} parent=1 // pred_region
      _
    $region17: #{tpu_custom_call.1} parent=1 // pred_fallthru
      _
    // Predicated region
    $region18: #{tpu_custom_call.1} parent=1 // pred_check
      _
    $region19: #{tpu_custom_call.1} parent=1 // pred_check_branch
      %34 = sbr.rel (0) target = $region21
    $region20: #{tpu_custom_call.1} parent=1 // pred_region
      _
    $region21: #{tpu_custom_call.1} parent=1 // pred_fallthru
      _
    // Predicated region
    $region22: #{tpu_custom_call.1} parent=1 // pred_check
      _
    $region23: #{tpu_custom_call.1} parent=1 // pred_check_branch
      %36 = sbr.rel (0) target = $region25
    $region24: #{tpu_custom_call.1} parent=1 // pred_region
      _
    $region25: #{tpu_custom_call.1} parent=1 // pred_fallthru
      _
    // Predicated region
    $region26: #{tpu_custom_call.1} parent=1 // pred_check
      _
    $region27: #{tpu_custom_call.1} parent=1 // pred_check_branch
      %38 = sbr.rel (0) target = $region29
    $region28: #{tpu_custom_call.1} parent=1 // pred_region
      _
    $region29: #{tpu_custom_call.1} parent=1 // pred_fallthru
      _
    // Predicated region
    $region30: #{tpu_custom_call.1} parent=1 // pred_check
      _
    $region31: #{tpu_custom_call.1} parent=1 // pred_check_branch
      %40 = sbr.rel (0) target = $region33
    $region32: #{tpu_custom_call.1} parent=1 // pred_region
      _
    $region33: #{tpu_custom_call.1} parent=1 // pred_fallthru
      _
    // Predicated region
    $region34: #{tpu_custom_call.1} parent=1 // pred_check
      _
    $region35: #{tpu_custom_call.1} parent=1 // pred_check_branch
      %42 = sbr.rel (0) target = $region37
    $region36: #{tpu_custom_call.1} parent=1 // pred_region
      %43 = dma.done [#allocation3], 512
    $region37: #{tpu_custom_call.1} parent=1 // pred_fallthru
      _
    %v44 = vld [vmem:[#allocation2] sm:$0xff]
    %v45 = vld [vmem:[#allocation2 + $0x8] sm:$0xff]
    %v46 = vld [vmem:[#allocation2 + $0x10] sm:$0xff]
    %v47 = vld [vmem:[#allocation2 + $0x18] sm:$0xff]
    %v48 = vld [vmem:[%s1] sm:$0xff]
    %v49 = vld [vmem:[%s1 + $0x8] sm:$0xff]
    %v50 = vld [vmem:[%s2] sm:$0xff]
    %v51 = vld [vmem:[%s2 + $0x8] sm:$0xff]
    %v52 = vld [vmem:[%s2 + $0x10] sm:$0xff]
    %v53 = vld [vmem:[%s2 + $0x18] sm:$0xff]
    %v54 = vld [vmem:[%s3] sm:$0xff]
    %56 = vset.pattern.permute.xlu0 0
    %57 = vperm.xlu0 %56, %v50
    %v58 = vpop.permute.xlu0 %57
    %61 = vset.pattern.permute.xlu0 0
    %62 = vperm.xlu0 %61, %v51
    %v63 = vpop.permute.xlu0 %62
    %66 = vset.pattern.permute.xlu0 0
    %67 = vperm.xlu0 %66, %v52
    %v68 = vpop.permute.xlu0 %67
    %71 = vset.pattern.permute.xlu0 0
    %72 = vperm.xlu0 %71, %v53
    %v73 = vpop.permute.xlu0 %72
    %v75 = vlaneseq
    %v76 = vshrl.u32 %v75, 7
    %v77 = vsub.s32 0, %v76
    %v78 = vrot.slane %v54, %v77
    %v79 = vsub.f32 %v58, %v78
    %v80 = vsub.f32 %v63, %v78
    %v81 = vsub.f32 %v68, %v78
    %v82 = vsub.f32 %v73, %v78
    %v83 = vmul.f32 %v79, %v79
    %v84 = vmul.f32 %v80, %v80
    %v85 = vmul.f32 %v81, %v81
    %v86 = vmul.f32 %v82, %v82
    %87 = vset.pattern.permute.xlu0 1
    %88 = vperm.xlu0 %87, %v50
    %v89 = vpop.permute.xlu0 %88
    %91 = vset.pattern.permute.xlu0 1
    %92 = vperm.xlu0 %91, %v51
    %v93 = vpop.permute.xlu0 %92
    %95 = vset.pattern.permute.xlu0 1
    %96 = vperm.xlu0 %95, %v52
    %v97 = vpop.permute.xlu0 %96
    %99 = vset.pattern.permute.xlu0 1
    %100 = vperm.xlu0 %99, %v53
    %v101 = vpop.permute.xlu0 %100
    %v103 = vlaneseq
    %v104 = vshrl.u32 %v103, 7
    %v105 = vsub.s32 1, %v104
    %v106 = vrot.slane %v54, %v105
    %v107 = vsub.f32 %v89, %v106
    %v108 = vsub.f32 %v93, %v106
    %v109 = vsub.f32 %v97, %v106
    %v110 = vsub.f32 %v101, %v106
    %v111 = vmul.f32 %v107, %v107
    %v112 = vmul.f32 %v108, %v108
    %v113 = vmul.f32 %v109, %v109
    %v114 = vmul.f32 %v110, %v110
    %v115 = vadd.f32 %v83, %v111
    %v116 = vadd.f32 %v84, %v112
    %v117 = vadd.f32 %v85, %v113
    %v118 = vadd.f32 %v86, %v114
    %v119 = vrsqrt.pop %v115
    %v120 = vmul.f32 %v115, %v119
    %vm121 = vcmp.eq.f32.partialorder %v115, inf
    %v122 = vsel %vm121, %v115, %v120
    %vm123 = vcmp.eq.f32.partialorder %v115, 0.0
    %v124 = vand.u32 %v115, 2147483648
    %v125 = vsel %vm123, %v124, %v122
    %v126 = vrsqrt.pop %v116
    %v127 = vmul.f32 %v116, %v126
    %vm128 = vcmp.eq.f32.partialorder %v116, inf
    %v129 = vsel %vm128, %v116, %v127
    %vm130 = vcmp.eq.f32.partialorder %v116, 0.0
    %v131 = vand.u32 %v116, 2147483648
    %v132 = vsel %vm130, %v131, %v129
    %v133 = vrsqrt.pop %v117
    %v134 = vmul.f32 %v117, %v133
    %vm135 = vcmp.eq.f32.partialorder %v117, inf
    %v136 = vsel %vm135, %v117, %v134
    %vm137 = vcmp.eq.f32.partialorder %v117, 0.0
    %v138 = vand.u32 %v117, 2147483648
    %v139 = vsel %vm137, %v138, %v136
    %v140 = vrsqrt.pop %v118
    %v141 = vmul.f32 %v118, %v140
    %vm142 = vcmp.eq.f32.partialorder %v118, inf
    %v143 = vsel %vm142, %v118, %v141
    %vm144 = vcmp.eq.f32.partialorder %v118, 0.0
    %v145 = vand.u32 %v118, 2147483648
    %v146 = vsel %vm144, %v145, %v143
    %v147 = vlaneseq
    %v148 = vand.u32 %v147, 127
    %v149 = vcvt.s32.f32 %v148
    %150 = vset.pattern.permute.xlu0 2
    %151 = vperm.xlu0 %150, %v50
    %v152 = vpop.permute.xlu0 %151
    %154 = vset.pattern.permute.xlu0 2
    %155 = vperm.xlu0 %154, %v51
    %v156 = vpop.permute.xlu0 %155
    %158 = vset.pattern.permute.xlu0 2
    %159 = vperm.xlu0 %158, %v52
    %v160 = vpop.permute.xlu0 %159
    %162 = vset.pattern.permute.xlu0 2
    %163 = vperm.xlu0 %162, %v53
    %v164 = vpop.permute.xlu0 %163
    %vm166 = vcmp.ge.f32.partialorder %v149, %v152
    %vm167 = vcmp.ge.f32.partialorder %v149, %v156
    %vm168 = vcmp.ge.f32.partialorder %v149, %v160
    %vm169 = vcmp.ge.f32.partialorder %v149, %v164
    %170 = vset.pattern.permute.xlu0 3
    %171 = vperm.xlu0 %170, %v50
    %v172 = vpop.permute.xlu0 %171
    %174 = vset.pattern.permute.xlu0 3
    %175 = vperm.xlu0 %174, %v51
    %v176 = vpop.permute.xlu0 %175
    %178 = vset.pattern.permute.xlu0 3
    %179 = vperm.xlu0 %178, %v52
    %v180 = vpop.permute.xlu0 %179
    %182 = vset.pattern.permute.xlu0 3
    %183 = vperm.xlu0 %182, %v53
    %v184 = vpop.permute.xlu0 %183
    %vm186 = vcmp.lt.f32.partialorder %v149, %v172
    %vm187 = vcmp.lt.f32.partialorder %v149, %v176
    %vm188 = vcmp.lt.f32.partialorder %v149, %v180
    %vm189 = vcmp.lt.f32.partialorder %v149, %v184
    %vm190 = vmand %vm166, %vm186
    %vm191 = vmand %vm167, %vm187
    %vm192 = vmand %vm168, %vm188
    %vm193 = vmand %vm169, %vm189
    %v194 = vsel %vm190, %v125, -inf
    %v195 = vsel %vm191, %v132, -inf
    %v196 = vsel %vm192, %v139, -inf
    %v197 = vsel %vm193, %v146, -inf
    %vm198 = vcmask 130048
    %v199 = vsel %vm198, %v194, -inf
    %200 = vmax.xlane.f32.xlu0 %v199
    %v201 = vpop.xlane.xlu0 %200
    %v202 = vsel %vm198, %v195, -inf
    %203 = vmax.xlane.f32.xlu0 %v202
    %v204 = vpop.xlane.xlu0 %203
    %v205 = vsel %vm198, %v196, -inf
    %206 = vmax.xlane.f32.xlu0 %v205
    %v207 = vpop.xlane.xlu0 %206
    %v208 = vsel %vm198, %v197, -inf
    %209 = vmax.xlane.f32.xlu0 %v208
    %v210 = vpop.xlane.xlu0 %209
    %v211 = vsub.f32 %v194, %v201
    %v212 = vsub.f32 %v195, %v204
    %v213 = vsub.f32 %v196, %v207
    %v214 = vsub.f32 %v197, %v210
    %v215 = vmul.f32 %v211, 1.442695
    %v216 = vpow.pop %v215
    %v217 = vmul.f32 %v212, 1.442695
    %v218 = vpow.pop %v217
    %v219 = vmul.f32 %v213, 1.442695
    %v220 = vpow.pop %v219
    %v221 = vmul.f32 %v214, 1.442695
    %v222 = vpow.pop %v221
    %v223 = vsel %vm198, %v216, 0.0
    %224 = vadd.xlane.f32.xlu0 %v223
    %v225 = vpop.xlane.xlu0 %224
    %v226 = vsel %vm198, %v218, 0.0
    %227 = vadd.xlane.f32.xlu0 %v226
    %v228 = vpop.xlane.xlu0 %227
    %v229 = vsel %vm198, %v220, 0.0
    %230 = vadd.xlane.f32.xlu0 %v229
    %v231 = vpop.xlane.xlu0 %230
    %v232 = vsel %vm198, %v222, 0.0
    %233 = vadd.xlane.f32.xlu0 %v232
    %v234 = vpop.xlane.xlu0 %233
    %v235 = vrcp.pop %v225
    %v236 = vmul.f32 %v216, %v235
    %v237 = vrcp.pop %v228
    %v238 = vmul.f32 %v218, %v237
    %v239 = vrcp.pop %v231
    %v240 = vmul.f32 %v220, %v239
    %v241 = vrcp.pop %v234
    %v242 = vmul.f32 %v222, %v241
    %v243 = vld [vmem:[%s7] sm:$0x1]
    %v244 = vld [vmem:[%s7 + $0x1] sm:$0x1]
    %v245 = vld [vmem:[%s7 + $0x2] sm:$0x1]
    %v246 = vld [vmem:[%s4] sm:$0xff]
    %v247 = vld [vmem:[%s4 + $0x8] sm:$0xff]
    %v248 = vld [vmem:[%s4 + $0x10] sm:$0xff]
    %v249 = vld [vmem:[%s4 + $0x18] sm:$0xff]
    %v250 = vld [vmem:[%s4 + $0x20] sm:$0xff]
    %v251 = vld [vmem:[%s4 + $0x28] sm:$0xff]
    %v252 = vld [vmem:[%s4 + $0x30] sm:$0xff]
    %v253 = vld [vmem:[%s4 + $0x38] sm:$0xff]
    %v254 = vld [vmem:[%s4 + $0x40] sm:$0xff]
    %v255 = vld [vmem:[%s4 + $0x48] sm:$0xff]
    %v256 = vld [vmem:[%s4 + $0x50] sm:$0xff]
    %v257 = vld [vmem:[%s4 + $0x58] sm:$0xff]
    %v258 = vld [vmem:[%s4 + $0x60] sm:$0xff]
    %v259 = vld [vmem:[%s4 + $0x68] sm:$0xff]
    %v260 = vld [vmem:[%s4 + $0x70] sm:$0xff]
    %v261 = vld [vmem:[%s4 + $0x78] sm:$0xff]
    %v262 = vlaneseq
    %v263 = vshrl.u32 %v262, 7
    %v264 = vsub.s32 0, %v263
    %v265 = vrot.slane %v243, %v264
    %266 = vmatprep.subr.mxu0 0.0
    %267 = vmatpush1.msra.mxu0 %v261
    %268 = vmatprep.subr.mxu0 0.0
    %269 = vmatpush1.msra.mxu0 %v260
    %270 = vmatprep.subr.mxu0 0.0
    %271 = vmatpush1.msra.mxu0 %v259
    %272 = vmatprep.subr.mxu0 0.0
    %273 = vmatpush1.msra.mxu0 %v258
    %274 = vmatprep.subr.mxu0 0.0
    %275 = vmatpush1.msra.mxu0 %v257
    %276 = vmatprep.subr.mxu0 0.0
    %277 = vmatpush1.msra.mxu0 %v256
    %278 = vmatprep.subr.mxu0 0.0
    %279 = vmatpush1.msra.mxu0 %v255
    %280 = vmatprep.subr.mxu0 0.0
    %281 = vmatpush1.msra.mxu0 %v254
    %282 = vmatprep.subr.mxu0 0.0
    %283 = vmatpush1.msra.mxu0 %v253
    %284 = vmatprep.subr.mxu0 0.0
    %285 = vmatpush1.msra.mxu0 %v252
    %286 = vmatprep.subr.mxu0 0.0
    %287 = vmatpush1.msra.mxu0 %v251
    %288 = vmatprep.subr.mxu0 0.0
    %289 = vmatpush1.msra.mxu0 %v250
    %290 = vmatprep.subr.mxu0 0.0
    %291 = vmatpush1.msra.mxu0 %v249
    %292 = vmatprep.subr.mxu0 0.0
    %293 = vmatpush1.msra.mxu0 %v248
    %294 = vmatprep.subr.mxu0 0.0
    %295 = vmatpush1.msra.mxu0 %v247
    %296 = vmatprep.subr.mxu0 0.0
    %297 = vmatpush1.msra.mxu0 %v246
    %298 = vmatprep.subr.mxu0 0.0
    %299 = vmatpush2.msra.mxu0 0.0
    %300 = vmatprep.subr.mxu0 0.0
    %301 = vmatpush2.msra.mxu0 0.0
    %302 = vmatprep.subr.mxu0 0.0
    %303 = vmatpush2.msra.mxu0 0.0
    %304 = vmatprep.subr.mxu0 0.0
    %305 = vmatpush2.msra.mxu0 0.0
    %306 = vmatprep.subr.mxu0 0.0
    %307 = vmatpush2.msra.mxu0 0.0
    %308 = vmatprep.subr.mxu0 0.0
    %309 = vmatpush2.msra.mxu0 0.0
    %310 = vmatprep.subr.mxu0 0.0
    %311 = vmatpush2.msra.mxu0 0.0
    %312 = vmatprep.subr.mxu0 0.0
    %313 = vmatpush2.msra.mxu0 0.0
    %314 = vmatprep.subr.mxu0 0.0
    %315 = vmatpush2.msra.mxu0 0.0
    %316 = vmatprep.subr.mxu0 0.0
    %317 = vmatpush2.msra.mxu0 0.0
    %318 = vmatprep.subr.mxu0 0.0
    %319 = vmatpush2.msra.mxu0 0.0
    %320 = vmatprep.subr.mxu0 0.0
    %321 = vmatpush2.msra.mxu0 0.0
    %322 = vmatprep.subr.mxu0 0.0
    %323 = vmatpush2.msra.mxu0 0.0
    %324 = vmatprep.subr.mxu0 0.0
    %325 = vmatpush2.msra.mxu0 0.0
    %326 = vmatprep.subr.mxu0 0.0
    %327 = vmatpush2.msra.mxu0 0.0
    %328 = vmatprep.subr.mxu0 0.0
    %329 = vmatpush2.msra.mxu0 0.0
    %330 = vmatprep.mubr.f32.mxu0 0.0
    %331 = vmatmul.mubr.f32.gmra.mxu0 %v44
    %v332 = vpop.f32.mrf.mxu0
    %v333 = vadd.f32 %v265, %v332
    %v334 = vpop.f32.mrf.mxu0
    %335 = vmatprep.mubr.f32.mxu0 0.0
    %336 = vmatmul.mubr.f32.gmra.mxu0 %v45
    %v337 = vpop.f32.mrf.mxu0
    %v338 = vadd.f32 %v265, %v337
    %v339 = vpop.f32.mrf.mxu0
    %340 = vmatprep.mubr.f32.mxu0 0.0
    %341 = vmatmul.mubr.f32.gmra.mxu0 %v46
    %v342 = vpop.f32.mrf.mxu0
    %v343 = vadd.f32 %v265, %v342
    %v344 = vpop.f32.mrf.mxu0
    %345 = vmatprep.mubr.f32.mxu0 0.0
    %346 = vmatmul.mubr.f32.gmra.mxu0 %v47
    %v347 = vpop.f32.mrf.mxu0
    %v348 = vadd.f32 %v265, %v347
    %v349 = vpop.f32.mrf.mxu0
    %350 = vdwg.mxu0
    %v351 = vmax.f32 %v333, 0.0
    %v352 = vmax.f32 %v338, 0.0
    %v353 = vmax.f32 %v343, 0.0
    %v354 = vmax.f32 %v348, 0.0
    %v355 = vld [vmem:[%s5] sm:$0xff]
    %v356 = vld [vmem:[%s5 + $0x8] sm:$0xff]
    %v357 = vld [vmem:[%s5 + $0x10] sm:$0xff]
    %v358 = vld [vmem:[%s5 + $0x18] sm:$0xff]
    %v359 = vld [vmem:[%s5 + $0x20] sm:$0xff]
    %v360 = vld [vmem:[%s5 + $0x28] sm:$0xff]
    %v361 = vld [vmem:[%s5 + $0x30] sm:$0xff]
    %v362 = vld [vmem:[%s5 + $0x38] sm:$0xff]
    %v363 = vlaneseq
    %v364 = vshrl.u32 %v363, 7
    %v365 = vsub.s32 0, %v364
    %v366 = vrot.slane %v244, %v365
    %vm367 = vcmask 523264
    %v369 = vsel %vm367, %v48, 0
    %v372 = vsel %vm367, %v49, 0
    %374 = vmatprep.subr.mxu0 0.0
    %375 = vmatpush1.msra.mxu0 0.0
    %376 = vmatprep.subr.mxu0 0.0
    %377 = vmatpush1.msra.mxu0 0.0
    %378 = vmatprep.subr.mxu0 0.0
    %379 = vmatpush1.msra.mxu0 0.0
    %380 = vmatprep.subr.mxu0 0.0
    %381 = vmatpush1.msra.mxu0 0.0
    %382 = vmatprep.subr.mxu0 0.0
    %383 = vmatpush1.msra.mxu0 0.0
    %384 = vmatprep.subr.mxu0 0.0
    %385 = vmatpush1.msra.mxu0 0.0
    %386 = vmatprep.subr.mxu0 0.0
    %387 = vmatpush1.msra.mxu0 0.0
    %388 = vmatprep.subr.mxu0 0.0
    %389 = vmatpush1.msra.mxu0 0.0
    %390 = vmatprep.subr.mxu0 0.0
    %391 = vmatpush1.msra.mxu0 %v362
    %392 = vmatprep.subr.mxu0 0.0
    %393 = vmatpush1.msra.mxu0 %v361
    %394 = vmatprep.subr.mxu0 0.0
    %395 = vmatpush1.msra.mxu0 %v360
    %396 = vmatprep.subr.mxu0 0.0
    %397 = vmatpush1.msra.mxu0 %v359
    %398 = vmatprep.subr.mxu0 0.0
    %399 = vmatpush1.msra.mxu0 %v358
    %400 = vmatprep.subr.mxu0 0.0
    %401 = vmatpush1.msra.mxu0 %v357
    %402 = vmatprep.subr.mxu0 0.0
    %403 = vmatpush1.msra.mxu0 %v356
    %404 = vmatprep.subr.mxu0 0.0
    %405 = vmatpush1.msra.mxu0 %v355
    %406 = vmatprep.subr.mxu0 0.0
    %407 = vmatpush2.msra.mxu0 0.0
    %408 = vmatprep.subr.mxu0 0.0
    %409 = vmatpush2.msra.mxu0 0.0
    %410 = vmatprep.subr.mxu0 0.0
    %411 = vmatpush2.msra.mxu0 0.0
    %412 = vmatprep.subr.mxu0 0.0
    %413 = vmatpush2.msra.mxu0 0.0
    %414 = vmatprep.subr.mxu0 0.0
    %415 = vmatpush2.msra.mxu0 0.0
    %416 = vmatprep.subr.mxu0 0.0
    %417 = vmatpush2.msra.mxu0 0.0
    %418 = vmatprep.subr.mxu0 0.0
    %419 = vmatpush2.msra.mxu0 0.0
    %420 = vmatprep.subr.mxu0 0.0
    %421 = vmatpush2.msra.mxu0 0.0
    %422 = vmatprep.subr.mxu0 0.0
    %423 = vmatpush2.msra.mxu0 0.0
    %424 = vmatprep.subr.mxu0 0.0
    %425 = vmatpush2.msra.mxu0 0.0
    %426 = vmatprep.subr.mxu0 0.0
    %427 = vmatpush2.msra.mxu0 0.0
    %428 = vmatprep.subr.mxu0 0.0
    %429 = vmatpush2.msra.mxu0 0.0
    %430 = vmatprep.subr.mxu0 0.0
    %431 = vmatpush2.msra.mxu0 0.0
    %432 = vmatprep.subr.mxu0 0.0
    %433 = vmatpush2.msra.mxu0 0.0
    %434 = vmatprep.subr.mxu0 0.0
    %435 = vmatpush2.msra.mxu0 0.0
    %436 = vmatprep.subr.mxu0 0.0
    %437 = vmatpush2.msra.mxu0 0.0
    %438 = vmatprep.mubr.f32.mxu0 0.0
    %439 = vmatmul.mubr.f32.gmra.mxu0 %v369
    %v440 = vpop.f32.mrf.mxu0
    %v441 = vadd.f32 %v366, %v440
    %v442 = vpop.f32.mrf.mxu0
    %443 = vmatprep.mubr.f32.mxu0 0.0
    %444 = vmatmul.mubr.f32.gmra.mxu0 %v372
    %v445 = vpop.f32.mrf.mxu0
    %v446 = vadd.f32 %v366, %v445
    %v447 = vpop.f32.mrf.mxu0
    %448 = vdwg.mxu0
    %v449 = vmax.f32 %v441, 0.0
    %v450 = vmax.f32 %v446, 0.0
    %v451 = vld [vmem:[%s6 + $0x40] sm:$0xff]
    %v452 = vld [vmem:[%s6 + $0x48] sm:$0xff]
    %v453 = vld [vmem:[%s6 + $0x50] sm:$0xff]
    %v454 = vld [vmem:[%s6 + $0x58] sm:$0xff]
    %v455 = vld [vmem:[%s6 + $0x60] sm:$0xff]
    %v456 = vld [vmem:[%s6 + $0x68] sm:$0xff]
    %v457 = vld [vmem:[%s6 + $0x70] sm:$0xff]
    %v458 = vld [vmem:[%s6 + $0x78] sm:$0xff]
    %v460 = vsel %vm367, %v449, 0
    %v463 = vsel %vm367, %v450, 0
    %465 = vmatprep.subr.mxu0 0.0
    %466 = vmatpush1.msra.mxu0 0.0
    %467 = vmatprep.subr.mxu0 0.0
    %468 = vmatpush1.msra.mxu0 0.0
    %469 = vmatprep.subr.mxu0 0.0
    %470 = vmatpush1.msra.mxu0 0.0
    %471 = vmatprep.subr.mxu0 0.0
    %472 = vmatpush1.msra.mxu0 0.0
    %473 = vmatprep.subr.mxu0 0.0
    %474 = vmatpush1.msra.mxu0 0.0
    %475 = vmatprep.subr.mxu0 0.0
    %476 = vmatpush1.msra.mxu0 0.0
    %477 = vmatprep.subr.mxu0 0.0
    %478 = vmatpush1.msra.mxu0 0.0
    %479 = vmatprep.subr.mxu0 0.0
    %480 = vmatpush1.msra.mxu0 0.0
    %481 = vmatprep.subr.mxu0 0.0
    %482 = vmatpush1.msra.mxu0 %v458
    %483 = vmatprep.subr.mxu0 0.0
    %484 = vmatpush1.msra.mxu0 %v457
    %485 = vmatprep.subr.mxu0 0.0
    %486 = vmatpush1.msra.mxu0 %v456
    %487 = vmatprep.subr.mxu0 0.0
    %488 = vmatpush1.msra.mxu0 %v455
    %489 = vmatprep.subr.mxu0 0.0
    %490 = vmatpush1.msra.mxu0 %v454
    %491 = vmatprep.subr.mxu0 0.0
    %492 = vmatpush1.msra.mxu0 %v453
    %493 = vmatprep.subr.mxu0 0.0
    %494 = vmatpush1.msra.mxu0 %v452
    %495 = vmatprep.subr.mxu0 0.0
    %496 = vmatpush1.msra.mxu0 %v451
    %497 = vmatprep.subr.mxu0 0.0
    %498 = vmatpush2.msra.mxu0 0.0
    %499 = vmatprep.subr.mxu0 0.0
    %500 = vmatpush2.msra.mxu0 0.0
    %501 = vmatprep.subr.mxu0 0.0
    %502 = vmatpush2.msra.mxu0 0.0
    %503 = vmatprep.subr.mxu0 0.0
    %504 = vmatpush2.msra.mxu0 0.0
    %505 = vmatprep.subr.mxu0 0.0
    %506 = vmatpush2.msra.mxu0 0.0
    %507 = vmatprep.subr.mxu0 0.0
    %508 = vmatpush2.msra.mxu0 0.0
    %509 = vmatprep.subr.mxu0 0.0
    %510 = vmatpush2.msra.mxu0 0.0
    %511 = vmatprep.subr.mxu0 0.0
    %512 = vmatpush2.msra.mxu0 0.0
    %513 = vmatprep.subr.mxu0 0.0
    %514 = vmatpush2.msra.mxu0 0.0
    %515 = vmatprep.subr.mxu0 0.0
    %516 = vmatpush2.msra.mxu0 0.0
    %517 = vmatprep.subr.mxu0 0.0
    %518 = vmatpush2.msra.mxu0 0.0
    %519 = vmatprep.subr.mxu0 0.0
    %520 = vmatpush2.msra.mxu0 0.0
    %521 = vmatprep.subr.mxu0 0.0
    %522 = vmatpush2.msra.mxu0 0.0
    %523 = vmatprep.subr.mxu0 0.0
    %524 = vmatpush2.msra.mxu0 0.0
    %525 = vmatprep.subr.mxu0 0.0
    %526 = vmatpush2.msra.mxu0 0.0
    %527 = vmatprep.subr.mxu0 0.0
    %528 = vmatpush2.msra.mxu0 0.0
    %529 = vmatprep.mubr.f32.mxu0 0.0
    %530 = vmatmul.mubr.f32.gmra.mxu0 %v460
    %v531 = vpop.f32.mrf.mxu0
    %v532 = vadd.f32 0.0, %v531
    %v533 = vpop.f32.mrf.mxu0
    %534 = vmatprep.mubr.f32.mxu0 0.0
    %535 = vmatmul.mubr.f32.gmra.mxu0 %v463
    %v536 = vpop.f32.mrf.mxu0
    %v537 = vadd.f32 0.0, %v536
    %v538 = vpop.f32.mrf.mxu0
    %539 = vdwg.mxu0
    %v540 = vld [vmem:[%s6] sm:$0xff]
    %v541 = vld [vmem:[%s6 + $0x8] sm:$0xff]
    %v542 = vld [vmem:[%s6 + $0x10] sm:$0xff]
    %v543 = vld [vmem:[%s6 + $0x18] sm:$0xff]
    %v544 = vld [vmem:[%s6 + $0x20] sm:$0xff]
    %v545 = vld [vmem:[%s6 + $0x28] sm:$0xff]
    %v546 = vld [vmem:[%s6 + $0x30] sm:$0xff]
    %v547 = vld [vmem:[%s6 + $0x38] sm:$0xff]
    %v549 = vsel %vm198, %v236, 0
    %v552 = vsel %vm198, %v238, 0
    %v555 = vsel %vm198, %v240, 0
    %v558 = vsel %vm198, %v242, 0
    %560 = vmatprep.subr.mxu0 0.0
    %561 = vmatpush1.msra.mxu0 0.0
    %562 = vmatprep.subr.mxu0 0.0
    %563 = vmatpush1.msra.mxu0 0.0
    %564 = vmatprep.subr.mxu0 0.0
    %565 = vmatpush1.msra.mxu0 0.0
    %566 = vmatprep.subr.mxu0 0.0
    %567 = vmatpush1.msra.mxu0 0.0
    %568 = vmatprep.subr.mxu0 0.0
    %569 = vmatpush1.msra.mxu0 0.0
    %570 = vmatprep.subr.mxu0 0.0
    %571 = vmatpush1.msra.mxu0 0.0
    %572 = vmatprep.subr.mxu0 0.0
    %573 = vmatpush1.msra.mxu0 0.0
    %574 = vmatprep.subr.mxu0 0.0
    %575 = vmatpush1.msra.mxu0 0.0
    %576 = vmatprep.subr.mxu0 0.0
    %577 = vmatpush1.msra.mxu0 0.0
    %578 = vmatprep.subr.mxu0 0.0
    %579 = vmatpush1.msra.mxu0 0.0
    %580 = vmatprep.subr.mxu0 0.0
    %581 = vmatpush1.msra.mxu0 0.0
    %582 = vmatprep.subr.mxu0 0.0
    %583 = vmatpush1.msra.mxu0 0.0
    %584 = vmatprep.subr.mxu0 0.0
    %585 = vmatpush1.msra.mxu0 0.0
    %586 = vmatprep.subr.mxu0 0.0
    %587 = vmatpush1.msra.mxu0 0.0
    %588 = vmatprep.subr.mxu0 0.0
    %589 = vmatpush1.msra.mxu0 %v537
    %590 = vmatprep.subr.mxu0 0.0
    %591 = vmatpush1.msra.mxu0 %v532
    %592 = vmatprep.subr.mxu0 0.0
    %593 = vmatpush2.msra.mxu0 0.0
    %594 = vmatprep.subr.mxu0 0.0
    %595 = vmatpush2.msra.mxu0 0.0
    %596 = vmatprep.subr.mxu0 0.0
    %597 = vmatpush2.msra.mxu0 0.0
    %598 = vmatprep.subr.mxu0 0.0
    %599 = vmatpush2.msra.mxu0 0.0
    %600 = vmatprep.subr.mxu0 0.0
    %601 = vmatpush2.msra.mxu0 0.0
    %602 = vmatprep.subr.mxu0 0.0
    %603 = vmatpush2.msra.mxu0 0.0
    %604 = vmatprep.subr.mxu0 0.0
    %605 = vmatpush2.msra.mxu0 0.0
    %606 = vmatprep.subr.mxu0 0.0
    %607 = vmatpush2.msra.mxu0 0.0
    %608 = vmatprep.subr.mxu0 0.0
    %609 = vmatpush2.msra.mxu0 0.0
    %610 = vmatprep.subr.mxu0 0.0
    %611 = vmatpush2.msra.mxu0 0.0
    %612 = vmatprep.subr.mxu0 0.0
    %613 = vmatpush2.msra.mxu0 0.0
    %614 = vmatprep.subr.mxu0 0.0
    %615 = vmatpush2.msra.mxu0 0.0
    %616 = vmatprep.subr.mxu0 0.0
    %617 = vmatpush2.msra.mxu0 0.0
    %618 = vmatprep.subr.mxu0 0.0
    %619 = vmatpush2.msra.mxu0 0.0
    %620 = vmatprep.subr.mxu0 0.0
    %621 = vmatpush2.msra.mxu0 0.0
    %622 = vmatprep.subr.mxu0 0.0
    %623 = vmatpush2.msra.mxu0 0.0
    %624 = vmatprep.mubr.f32.mxu0 0.0
    %625 = vmatmul.mubr.f32.gmra.mxu0 %v549
    %v626 = vpop.f32.mrf.mxu0
    %v627 = vadd.f32 0.0, %v626
    %v628 = vpop.f32.mrf.mxu0
    %629 = vmatprep.mubr.f32.mxu0 0.0
    %630 = vmatmul.mubr.f32.gmra.mxu0 %v552
    %v631 = vpop.f32.mrf.mxu0
    %v632 = vadd.f32 0.0, %v631
    %v633 = vpop.f32.mrf.mxu0
    %634 = vmatprep.mubr.f32.mxu0 0.0
    %635 = vmatmul.mubr.f32.gmra.mxu0 %v555
    %v636 = vpop.f32.mrf.mxu0
    %v637 = vadd.f32 0.0, %v636
    %v638 = vpop.f32.mrf.mxu0
    %639 = vmatprep.mubr.f32.mxu0 0.0
    %640 = vmatmul.mubr.f32.gmra.mxu0 %v558
    %v641 = vpop.f32.mrf.mxu0
    %v642 = vadd.f32 0.0, %v641
    %v643 = vpop.f32.mrf.mxu0
    %644 = vdwg.mxu0
    %v646 = vsel %vm367, %v351, 0
    %v649 = vsel %vm367, %v352, 0
    %v652 = vsel %vm367, %v353, 0
    %v655 = vsel %vm367, %v354, 0
    %657 = vmatprep.subr.mxu0 0.0
    %658 = vmatpush1.msra.mxu0 0.0
    %659 = vmatprep.subr.mxu0 0.0
    %660 = vmatpush1.msra.mxu0 0.0
    %661 = vmatprep.subr.mxu0 0.0
    %662 = vmatpush1.msra.mxu0 0.0
    %663 = vmatprep.subr.mxu0 0.0
    %664 = vmatpush1.msra.mxu0 0.0
    %665 = vmatprep.subr.mxu0 0.0
    %666 = vmatpush1.msra.mxu0 0.0
    %667 = vmatprep.subr.mxu0 0.0
    %668 = vmatpush1.msra.mxu0 0.0
    %669 = vmatprep.subr.mxu0 0.0
    %670 = vmatpush1.msra.mxu0 0.0
    %671 = vmatprep.subr.mxu0 0.0
    %672 = vmatpush1.msra.mxu0 0.0
    %673 = vmatprep.subr.mxu0 0.0
    %674 = vmatpush1.msra.mxu0 %v547
    %675 = vmatprep.subr.mxu0 0.0
    %676 = vmatpush1.msra.mxu0 %v546
    %677 = vmatprep.subr.mxu0 0.0
    %678 = vmatpush1.msra.mxu0 %v545
    %679 = vmatprep.subr.mxu0 0.0
    %680 = vmatpush1.msra.mxu0 %v544
    %681 = vmatprep.subr.mxu0 0.0
    %682 = vmatpush1.msra.mxu0 %v543
    %683 = vmatprep.subr.mxu0 0.0
    %684 = vmatpush1.msra.mxu0 %v542
    %685 = vmatprep.subr.mxu0 0.0
    %686 = vmatpush1.msra.mxu0 %v541
    %687 = vmatprep.subr.mxu0 0.0
    %688 = vmatpush1.msra.mxu0 %v540
    %689 = vmatprep.subr.mxu0 0.0
    %690 = vmatpush2.msra.mxu0 0.0
    %691 = vmatprep.subr.mxu0 0.0
    %692 = vmatpush2.msra.mxu0 0.0
    %693 = vmatprep.subr.mxu0 0.0
    %694 = vmatpush2.msra.mxu0 0.0
    %695 = vmatprep.subr.mxu0 0.0
    %696 = vmatpush2.msra.mxu0 0.0
    %697 = vmatprep.subr.mxu0 0.0
    %698 = vmatpush2.msra.mxu0 0.0
    %699 = vmatprep.subr.mxu0 0.0
    %700 = vmatpush2.msra.mxu0 0.0
    %701 = vmatprep.subr.mxu0 0.0
    %702 = vmatpush2.msra.mxu0 0.0
    %703 = vmatprep.subr.mxu0 0.0
    %704 = vmatpush2.msra.mxu0 0.0
    %705 = vmatprep.subr.mxu0 0.0
    %706 = vmatpush2.msra.mxu0 0.0
    %707 = vmatprep.subr.mxu0 0.0
    %708 = vmatpush2.msra.mxu0 0.0
    %709 = vmatprep.subr.mxu0 0.0
    %710 = vmatpush2.msra.mxu0 0.0
    %711 = vmatprep.subr.mxu0 0.0
    %712 = vmatpush2.msra.mxu0 0.0
    %713 = vmatprep.subr.mxu0 0.0
    %714 = vmatpush2.msra.mxu0 0.0
    %715 = vmatprep.subr.mxu0 0.0
    %716 = vmatpush2.msra.mxu0 0.0
    %717 = vmatprep.subr.mxu0 0.0
    %718 = vmatpush2.msra.mxu0 0.0
    %719 = vmatprep.subr.mxu0 0.0
    %720 = vmatpush2.msra.mxu0 0.0
    %721 = vmatprep.mubr.f32.mxu0 0.0
    %722 = vmatmul.mubr.f32.gmra.mxu0 %v646
    %v723 = vpop.f32.mrf.mxu0
    %v724 = vadd.f32 %v627, %v723
    %v725 = vpop.f32.mrf.mxu0
    %726 = vmatprep.mubr.f32.mxu0 0.0
    %727 = vmatmul.mubr.f32.gmra.mxu0 %v649
    %v728 = vpop.f32.mrf.mxu0
    %v729 = vadd.f32 %v632, %v728
    %v730 = vpop.f32.mrf.mxu0
    %731 = vmatprep.mubr.f32.mxu0 0.0
    %732 = vmatmul.mubr.f32.gmra.mxu0 %v652
    %v733 = vpop.f32.mrf.mxu0
    %v734 = vadd.f32 %v637, %v733
    %v735 = vpop.f32.mrf.mxu0
    %736 = vmatprep.mubr.f32.mxu0 0.0
    %737 = vmatmul.mubr.f32.gmra.mxu0 %v655
    %v738 = vpop.f32.mrf.mxu0
    %v739 = vadd.f32 %v642, %v738
    %v740 = vpop.f32.mrf.mxu0
    %741 = vdwg.mxu0
    %v742 = vlaneseq
    %v743 = vshrl.u32 %v742, 7
    %v744 = vsub.s32 0, %v743
    %v745 = vrot.slane %v245, %v744
    %v746 = vadd.f32 %v724, %v745
    %v747 = vadd.f32 %v729, %v745
    %v748 = vadd.f32 %v734, %v745
    %v749 = vadd.f32 %v739, %v745
    %v750 = vmax.f32 %v746, 0.0
    %v751 = vmax.f32 %v747, 0.0
    %v752 = vmax.f32 %v748, 0.0
    %v753 = vmax.f32 %v749, 0.0
    %v754 = vadd.f32 %v44, %v750
    %v755 = vadd.f32 %v45, %v751
    %v756 = vadd.f32 %v46, %v752
    %v757 = vadd.f32 %v47, %v753
    %758 = vst [vmem:[#allocation5] sm:$0xff] %v754
    %759 = vst [vmem:[#allocation5 + $0x8] sm:$0xff] %v755
    %760 = vst [vmem:[#allocation5 + $0x10] sm:$0xff] %v756
    %761 = vst [vmem:[#allocation5 + $0x18] sm:$0xff] %v757
    // Predicated region
    $region38: #{tpu_custom_call.1} parent=1 // pred_check
      _
    $region39: #{tpu_custom_call.1} parent=1 // pred_check_branch
      %763 = sbr.rel (0) target = $region41
    $region40: #{tpu_custom_call.1} parent=1 // pred_region
      %s765 = ssub.s32 512, 512
      %766 = vsyncadd [#allocation4], %s765
      %s767 = sshll.u32 [#allocation5], 4
      %s768 = int_to_ptr.vmem [resolvable:$true] %s767
      %773 = dma.vmem_to_hbm [thread:$0]  %s768, 512, %s8, [#allocation4], 128, 128, 8
    $region41: #{tpu_custom_call.1} parent=1 // pred_fallthru
      _
    // Predicated region
    $region42: #{tpu_custom_call.1} parent=1 // pred_check
      _
    $region43: #{tpu_custom_call.1} parent=1 // pred_check_branch
      %775 = sbr.rel (0) target = $region45
    $region44: #{tpu_custom_call.1} parent=1 // pred_region
      %776 = dma.done [#allocation4], 512
    $region45: #{tpu_custom_call.1} parent=1 // pred_fallthru
      _
    %777 = vsyncpa [#allocation3], 1
    %778 = vsyncpa [#allocation4], 1

</llo_original>
